<compile_context>
chip_gen: v5e
topology: v5e:2x2
jax: 0.10.0
libtpu: 0.0.40
codegen_flags: <defaults>
</compile_context>

<pallas_src>
import functools
from collections import namedtuple

import jax
import jax.numpy as jnp
from jax.experimental import pallas as pl
from jax.experimental.pallas import tpu as pltpu

Scene = namedtuple("Scene", ["position", "number", "type", "size", "color"])


def _round_up(x, m):
    return ((x + m - 1) // m) * m


# ----------------------------- Pallas kernel ------------------------------ #
def _rule_select_kernel(*refs, A, scales):
    # refs layout: [out_0..out_{A-1}, tst_0..tst_{A-1}, sel_0..sel_{A-1}, w_0..w_{A-1}]
    #   out_a : (B, R, KHp)   tst_a : (B, KHp)
    #   sel_a : (B, KHp)      w_a   : (B, R)
    out_refs = refs[:A]
    tst_refs = refs[A:2 * A]
    sel_refs = refs[2 * A:3 * A]
    w_refs = refs[3 * A:4 * A]

    for a in range(A):  # trace-time unrolled loop over attributes
        o = out_refs[a][...].astype(jnp.float32)            # (B, R, KHp)
        tst = tst_refs[a][...].astype(jnp.float32)          # (B, KHp)

        # synthetic loss_fn.score: dot product along hidden, summed over panels.
        # Tests are zero-padded (unused panels / lane pad), so padded lanes add 0;
        # mean-over-panels and temperature are folded into `scales[a]`.
        # TODO(synk): if B >= ~64 or K*H >= ~256, route this contraction and the
        # mixture below through lax.dot_general (MXU) instead of the VPU/XLU path.
        s = jnp.sum(o * tst[:, None, :], axis=-1) * scales[a]   # (B, R)

        # softmax over the rule axis (exact divide keeps 1e-5 weight tolerance)
        m = jnp.max(s, axis=-1, keepdims=True)                  # (B, 1)
        e = jnp.exp(s - m)
        w = e / jnp.sum(e, axis=-1, keepdims=True)               # (B, R)
        w_refs[a][...] = w

        # einsum('ijkh,ij->ikh'): rule-weighted mixture, lane-dense (B, KHp)
        sel = jnp.sum(o * w[:, :, None], axis=1)                 # (B, KHp)
        sel_refs[a][...] = sel.astype(sel_refs[a].dtype)


def rule_select(outputs_list, tests_list, temperature):
    """outputs_list[a]: (B,R,K,H), tests_list[a]: (B,Kt,H)
       -> (sels[a]: (B,K,H), weights[a]: (B,R))."""
    A = len(outputs_list)
    out_flats, tst_flats = [], []
    in_specs, out_specs_sel, out_specs_w = [], [], []
    out_shapes_sel, out_shapes_w = [], []
    scales, meta = [], []

    for o, tst in zip(outputs_list, tests_list):
        B, R, K, H = o.shape
        Kt = tst.shape[1]
        KH = K * H
        KHp = _round_up(KH, 128)                          # lane-dense width

        o_flat = o.reshape(B, R, KH)
        if KHp > KH:
            o_flat = jnp.pad(o_flat, ((0, 0), (0, 0), (0, KHp - KH)))
        t_flat = tst.reshape(B, Kt * H)
        if KHp > Kt * H:                                  # covers panel pad + lane pad
            t_flat = jnp.pad(t_flat, ((0, 0), (0, KHp - Kt * H)))

        out_flats.append(o_flat)
        tst_flats.append(t_flat)
        in_specs.append(pl.BlockSpec((B, R, KHp), lambda i: (0, 0, 0)))
        out_specs_sel.append(pl.BlockSpec((B, KHp), lambda i: (0, 0)))
        out_specs_w.append(pl.BlockSpec((B, R), lambda i: (0, 0)))
        out_shapes_sel.append(jax.ShapeDtypeStruct((B, KHp), o.dtype))
        out_shapes_w.append(jax.ShapeDtypeStruct((B, R), jnp.float32))
        scales.append(1.0 / (float(Kt) * float(temperature)))
        meta.append((B, K, H, KH))

    in_specs = in_specs + [pl.BlockSpec(t.shape, lambda i: (0, 0)) for t in tst_flats]

    kern = functools.partial(_rule_select_kernel, A=A, scales=tuple(scales))

    results = pl.pallas_call(
        kern,
        out_shape=tuple(out_shapes_sel + out_shapes_w),
        grid=(1,),                                        # single step: whole working set in VMEM
        in_specs=in_specs,
        out_specs=tuple(out_specs_sel + out_specs_w),
        compiler_params=pltpu.CompilerParams(dimension_semantics=("arbitrary",)),
    )(*out_flats, *tst_flats)

    sels_flat, weights = results[:A], list(results[A:])
    sels = []
    for a, (B, K, H, KH) in enumerate(meta):
        sels.append(sels_flat[a][:, :KH].reshape(B, K, H))
    return sels, weights


# --------------------------- Module equivalent ----------------------------- #
class RuleSelector:
    # TODO(synk): loss_fn is an injected dependency in the original; we use a
    # dot-product similarity score along the hidden dim as the synthetic loss_fn.
    def __init__(self, loss_fn=None, temperature=1.0, rule_selector="sample"):
        self.loss_fn = loss_fn
        self.temperature = temperature
        self.train_mode = True

    def train(self):
        self.train_mode = True

    def eval(self):
        self.train_mode = False

    def _prep_tests(self, tests, candidates, targets):
        if self.train_mode:
            chosen = candidates[jnp.arange(candidates.shape[0]), targets]    # (B, H)
            tests = jnp.concatenate([tests, chosen[:, None, :]], axis=1)     # (B, Kt+1, H)
        return tests

    def attribute_forward(self, outputs, tests, candidates=None, targets=None):
        tests = self._prep_tests(tests, candidates, targets)
        sels, ws = rule_select([outputs], [tests], self.temperature)
        return sels[0], ws[0]

    def forward(self, outputs, tests, candidates=None, targets=None, use_position=True):
        use_pos = outputs.position is not None and use_position
        names = (["position", "number"] if use_pos else []) + ["type", "size", "color"]
        # Single fused pallas_call over all attributes, passed as separate
        # full-block inputs (no wrapper-side stack / HBM concat).
        outs = [getattr(outputs, n) for n in names]
        tsts = [self._prep_tests(getattr(tests, n), getattr(candidates, n, None), targets)
                for n in names]
        sels, ws = rule_select(outs, tsts, self.temperature)
        sel = dict(zip(names, sels))
        wts = dict(zip(names, ws))

        pos_output, pos_rules = sel.get("position"), wts.get("position")
        num_output, num_rules = sel.get("number"), wts.get("number")
        rules = [pos_rules, num_rules, wts["color"], wts["size"], wts["type"]]
        scene_out = Scene(pos_output, num_output, sel["type"], sel["size"], sel["color"])
        return (scene_out, rules)


# ------------------------------ Reference ---------------------------------- #
def _ref_attribute(outputs, tests, candidates, targets, temperature, train):
    if train:
        chosen = candidates[jnp.arange(candidates.shape[0]), targets]
        tst = jnp.concatenate([tests, chosen[:, None, :]], axis=1)
        scored = outputs
    else:
        tst = tests
        scored = outputs[:, :, :2]
    s = jnp.mean(jnp.sum(scored * tst[:, None, :, :], axis=-1), axis=-1)
    w = jax.nn.softmax(s / temperature, axis=-1)
    sel = jnp.einsum("brkh,br->bkh", outputs, w)
    return sel, w


# -------------------------------- Main -------------------------------------- #
if __name__ == "__main__":
    B, R, K, H, C = 2, 6, 3, 32, 8    # batch, rules, panels, hidden, candidates
    temperature = 1.0

    key = jax.random.PRNGKey(0)
    ks = jax.random.split(key, 16)

    def mk_attr(i):
        out = jax.random.normal(ks[3 * i + 0], (B, R, K, H), dtype=jnp.float32)
        tst = jax.random.normal(ks[3 * i + 1], (B, K - 1, H), dtype=jnp.float32)
        cand = jax.random.normal(ks[3 * i + 2], (B, C, H), dtype=jnp.float32)
        return out, tst, cand

    attrs = [mk_attr(i) for i in range(5)]
    outputs = Scene(*[a[0] for a in attrs])
    tests = Scene(*[a[1] for a in attrs])
    candidates = Scene(*[a[2] for a in attrs])
    targets = jnp.array([1, 4], dtype=jnp.int32)

    selector = RuleSelector(loss_fn=None, temperature=temperature)

    # ---- train mode forward over the full Scene (single fused pallas_call) ----
    scene_out, rules = selector.forward(outputs, tests, candidates, targets)
    jax.block_until_ready(scene_out.color)
    jax.block_until_ready(rules[-1])

    # numeric check (train mode) against pure-JAX reference, per attribute
    for name in Scene._fields:
        sel_ref, w_ref = _ref_attribute(
            getattr(outputs, name), getattr(tests, name),
            getattr(candidates, name), targets, temperature, train=True)
        sel_k = getattr(scene_out, name)
        w_k = {"position": rules[0], "number": rules[1], "type": rules[4],
               "size": rules[3], "color": rules[2]}[name]
        assert jnp.allclose(sel_k, sel_ref, atol=1e-4, rtol=1e-4)
        assert jnp.allclose(w_k, w_ref, atol=1e-5, rtol=1e-5)

    # ---- eval mode check (scores only the first 2 panels of outputs) ----
    selector.eval()
    sel_e, w_e = selector.attribute_forward(outputs.type, tests.type)
    sel_er, w_er = _ref_attribute(outputs.type, tests.type, candidates.type,
                                  targets, temperature, train=False)
    jax.block_until_ready(sel_e)
    assert jnp.allclose(sel_e, sel_er, atol=1e-4, rtol=1e-4)
    assert jnp.allclose(w_e, w_er, atol=1e-5, rtol=1e-5)

    print("KERNEL_OK")
</pallas_src>

<mosaic_0001>
module attributes {stable_mosaic.version = 11 : i64} {
  func.func @_rule_select_kernel(%arg0: i32, %arg1: memref<2x6x128xf32, #tpu.memory_space<vmem>>, %arg2: memref<2x6x128xf32, #tpu.memory_space<vmem>>, %arg3: memref<2x6x128xf32, #tpu.memory_space<vmem>>, %arg4: memref<2x6x128xf32, #tpu.memory_space<vmem>>, %arg5: memref<2x6x128xf32, #tpu.memory_space<vmem>>, %arg6: memref<2x128xf32, #tpu.memory_space<vmem>>, %arg7: memref<2x128xf32, #tpu.memory_space<vmem>>, %arg8: memref<2x128xf32, #tpu.memory_space<vmem>>, %arg9: memref<2x128xf32, #tpu.memory_space<vmem>>, %arg10: memref<2x128xf32, #tpu.memory_space<vmem>>, %arg11: memref<2x128xf32, #tpu.memory_space<vmem>>, %arg12: memref<2x128xf32, #tpu.memory_space<vmem>>, %arg13: memref<2x128xf32, #tpu.memory_space<vmem>>, %arg14: memref<2x128xf32, #tpu.memory_space<vmem>>, %arg15: memref<2x128xf32, #tpu.memory_space<vmem>>, %arg16: memref<2x6xf32, #tpu.memory_space<vmem>>, %arg17: memref<2x6xf32, #tpu.memory_space<vmem>>, %arg18: memref<2x6xf32, #tpu.memory_space<vmem>>, %arg19: memref<2x6xf32, #tpu.memory_space<vmem>>, %arg20: memref<2x6xf32, #tpu.memory_space<vmem>>) attributes {dimension_semantics = [#tpu.dimension_semantics<arbitrary>], iteration_bounds = array<i64: 1>, scalar_prefetch = 0 : i64, scratch_operands = 0 : i64, tpu.core_type = #tpu.core_type<tc>, window_params = [{pipeline_mode = #tpu.pipeline_mode<synchronous>, transform_indices = @transform_0, window_bounds = array<i64: 2, 6, 128>}, {pipeline_mode = #tpu.pipeline_mode<synchronous>, transform_indices = @transform_1, window_bounds = array<i64: 2, 6, 128>}, {pipeline_mode = #tpu.pipeline_mode<synchronous>, transform_indices = @transform_2, window_bounds = array<i64: 2, 6, 128>}, {pipeline_mode = #tpu.pipeline_mode<synchronous>, transform_indices = @transform_3, window_bounds = array<i64: 2, 6, 128>}, {pipeline_mode = #tpu.pipeline_mode<synchronous>, transform_indices = @transform_4, window_bounds = array<i64: 2, 6, 128>}, {pipeline_mode = #tpu.pipeline_mode<synchronous>, transform_indices = @transform_5, window_bounds = array<i64: 2, 128>}, {pipeline_mode = #tpu.pipeline_mode<synchronous>, transform_indices = @transform_6, window_bounds = array<i64: 2, 128>}, {pipeline_mode = #tpu.pipeline_mode<synchronous>, transform_indices = @transform_7, window_bounds = array<i64: 2, 128>}, {pipeline_mode = #tpu.pipeline_mode<synchronous>, transform_indices = @transform_8, window_bounds = array<i64: 2, 128>}, {pipeline_mode = #tpu.pipeline_mode<synchronous>, transform_indices = @transform_9, window_bounds = array<i64: 2, 128>}, {pipeline_mode = #tpu.pipeline_mode<synchronous>, transform_indices = @transform_10, window_bounds = array<i64: 2, 128>}, {pipeline_mode = #tpu.pipeline_mode<synchronous>, transform_indices = @transform_11, window_bounds = array<i64: 2, 128>}, {pipeline_mode = #tpu.pipeline_mode<synchronous>, transform_indices = @transform_12, window_bounds = array<i64: 2, 128>}, {pipeline_mode = #tpu.pipeline_mode<synchronous>, transform_indices = @transform_13, window_bounds = array<i64: 2, 128>}, {pipeline_mode = #tpu.pipeline_mode<synchronous>, transform_indices = @transform_14, window_bounds = array<i64: 2, 128>}, {pipeline_mode = #tpu.pipeline_mode<synchronous>, transform_indices = @transform_15, window_bounds = array<i64: 2, 6>}, {pipeline_mode = #tpu.pipeline_mode<synchronous>, transform_indices = @transform_16, window_bounds = array<i64: 2, 6>}, {pipeline_mode = #tpu.pipeline_mode<synchronous>, transform_indices = @transform_17, window_bounds = array<i64: 2, 6>}, {pipeline_mode = #tpu.pipeline_mode<synchronous>, transform_indices = @transform_18, window_bounds = array<i64: 2, 6>}, {pipeline_mode = #tpu.pipeline_mode<synchronous>, transform_indices = @transform_19, window_bounds = array<i64: 2, 6>}]} {
    %c0 = arith.constant 0 : index
    %c0_0 = arith.constant 0 : index
    %c0_1 = arith.constant 0 : index
    %0 = vector.load %arg1[%c0, %c0_0, %c0_1] : memref<2x6x128xf32, #tpu.memory_space<vmem>>, vector<2x6x128xf32>
    %c0_2 = arith.constant 0 : index
    %c0_3 = arith.constant 0 : index
    %1 = vector.load %arg6[%c0_2, %c0_3] : memref<2x128xf32, #tpu.memory_space<vmem>>, vector<2x128xf32>
    %2 = vector.shape_cast %1 : vector<2x128xf32> to vector<2x1x128xf32>
    %3 = vector.broadcast %2 : vector<2x1x128xf32> to vector<2x6x128xf32>
    %4 = arith.mulf %0, %3 : vector<2x6x128xf32>
    %cst = arith.constant dense<0.000000e+00> : vector<2x6xf32>
    %5 = vector.multi_reduction <add>, %4, %cst [2] : vector<2x6x128xf32> to vector<2x6xf32>
    %cst_4 = arith.constant 0.333333343 : f32
    %6 = vector.broadcast %cst_4 : f32 to vector<2x6xf32>
    %7 = arith.mulf %5, %6 : vector<2x6xf32>
    %cst_5 = arith.constant dense<0xFF800000> : vector<2xf32>
    %8 = vector.multi_reduction <maximumf>, %7, %cst_5 [1] : vector<2x6xf32> to vector<2xf32>
    %9 = vector.shape_cast %8 : vector<2xf32> to vector<2x1xf32>
    %10 = vector.broadcast %9 : vector<2x1xf32> to vector<2x6xf32>
    %11 = arith.subf %7, %10 : vector<2x6xf32>
    %12 = math.exp %11 : vector<2x6xf32>
    %cst_6 = arith.constant dense<0.000000e+00> : vector<2xf32>
    %13 = vector.multi_reduction <add>, %12, %cst_6 [1] : vector<2x6xf32> to vector<2xf32>
    %14 = vector.shape_cast %13 : vector<2xf32> to vector<2x1xf32>
    %15 = vector.broadcast %14 : vector<2x1xf32> to vector<2x6xf32>
    %16 = arith.divf %12, %15 : vector<2x6xf32>
    %c0_7 = arith.constant 0 : index
    %c0_8 = arith.constant 0 : index
    %17 = vector.load %arg16[%c0_7, %c0_8] : memref<2x6xf32, #tpu.memory_space<vmem>>, vector<2x6xf32>
    tpu.vector_store %arg16[%c0_7, %c0_8], %16 {strides = array<i32>} : memref<2x6xf32, #tpu.memory_space<vmem>>, vector<2x6xf32>,
    %18 = vector.shape_cast %16 : vector<2x6xf32> to vector<2x6x1xf32>
    %19 = vector.broadcast %18 : vector<2x6x1xf32> to vector<2x6x128xf32>
    %20 = arith.mulf %0, %19 : vector<2x6x128xf32>
    %cst_9 = arith.constant dense<0.000000e+00> : vector<2x128xf32>
    %21 = vector.multi_reduction <add>, %20, %cst_9 [1] : vector<2x6x128xf32> to vector<2x128xf32>
    %c0_10 = arith.constant 0 : index
    %c0_11 = arith.constant 0 : index
    %22 = vector.load %arg11[%c0_10, %c0_11] : memref<2x128xf32, #tpu.memory_space<vmem>>, vector<2x128xf32>
    tpu.vector_store %arg11[%c0_10, %c0_11], %21 {strides = array<i32>} : memref<2x128xf32, #tpu.memory_space<vmem>>, vector<2x128xf32>,
    %c0_12 = arith.constant 0 : index
    %c0_13 = arith.constant 0 : index
    %c0_14 = arith.constant 0 : index
    %23 = vector.load %arg2[%c0_12, %c0_13, %c0_14] : memref<2x6x128xf32, #tpu.memory_space<vmem>>, vector<2x6x128xf32>
    %c0_15 = arith.constant 0 : index
    %c0_16 = arith.constant 0 : index
    %24 = vector.load %arg7[%c0_15, %c0_16] : memref<2x128xf32, #tpu.memory_space<vmem>>, vector<2x128xf32>
    %25 = vector.shape_cast %24 : vector<2x128xf32> to vector<2x1x128xf32>
    %26 = vector.broadcast %25 : vector<2x1x128xf32> to vector<2x6x128xf32>
    %27 = arith.mulf %23, %26 : vector<2x6x128xf32>
    %cst_17 = arith.constant dense<0.000000e+00> : vector<2x6xf32>
    %28 = vector.multi_reduction <add>, %27, %cst_17 [2] : vector<2x6x128xf32> to vector<2x6xf32>
    %cst_18 = arith.constant 0.333333343 : f32
    %29 = vector.broadcast %cst_18 : f32 to vector<2x6xf32>
    %30 = arith.mulf %28, %29 : vector<2x6xf32>
    %cst_19 = arith.constant dense<0xFF800000> : vector<2xf32>
    %31 = vector.multi_reduction <maximumf>, %30, %cst_19 [1] : vector<2x6xf32> to vector<2xf32>
    %32 = vector.shape_cast %31 : vector<2xf32> to vector<2x1xf32>
    %33 = vector.broadcast %32 : vector<2x1xf32> to vector<2x6xf32>
    %34 = arith.subf %30, %33 : vector<2x6xf32>
    %35 = math.exp %34 : vector<2x6xf32>
    %cst_20 = arith.constant dense<0.000000e+00> : vector<2xf32>
    %36 = vector.multi_reduction <add>, %35, %cst_20 [1] : vector<2x6xf32> to vector<2xf32>
    %37 = vector.shape_cast %36 : vector<2xf32> to vector<2x1xf32>
    %38 = vector.broadcast %37 : vector<2x1xf32> to vector<2x6xf32>
    %39 = arith.divf %35, %38 : vector<2x6xf32>
    %c0_21 = arith.constant 0 : index
    %c0_22 = arith.constant 0 : index
    %40 = vector.load %arg17[%c0_21, %c0_22] : memref<2x6xf32, #tpu.memory_space<vmem>>, vector<2x6xf32>
    tpu.vector_store %arg17[%c0_21, %c0_22], %39 {strides = array<i32>} : memref<2x6xf32, #tpu.memory_space<vmem>>, vector<2x6xf32>,
    %41 = vector.shape_cast %39 : vector<2x6xf32> to vector<2x6x1xf32>
    %42 = vector.broadcast %41 : vector<2x6x1xf32> to vector<2x6x128xf32>
    %43 = arith.mulf %23, %42 : vector<2x6x128xf32>
    %cst_23 = arith.constant dense<0.000000e+00> : vector<2x128xf32>
    %44 = vector.multi_reduction <add>, %43, %cst_23 [1] : vector<2x6x128xf32> to vector<2x128xf32>
    %c0_24 = arith.constant 0 : index
    %c0_25 = arith.constant 0 : index
    %45 = vector.load %arg12[%c0_24, %c0_25] : memref<2x128xf32, #tpu.memory_space<vmem>>, vector<2x128xf32>
    tpu.vector_store %arg12[%c0_24, %c0_25], %44 {strides = array<i32>} : memref<2x128xf32, #tpu.memory_space<vmem>>, vector<2x128xf32>,
    %c0_26 = arith.constant 0 : index
    %c0_27 = arith.constant 0 : index
    %c0_28 = arith.constant 0 : index
    %46 = vector.load %arg3[%c0_26, %c0_27, %c0_28] : memref<2x6x128xf32, #tpu.memory_space<vmem>>, vector<2x6x128xf32>
    %c0_29 = arith.constant 0 : index
    %c0_30 = arith.constant 0 : index
    %47 = vector.load %arg8[%c0_29, %c0_30] : memref<2x128xf32, #tpu.memory_space<vmem>>, vector<2x128xf32>
    %48 = vector.shape_cast %47 : vector<2x128xf32> to vector<2x1x128xf32>
    %49 = vector.broadcast %48 : vector<2x1x128xf32> to vector<2x6x128xf32>
    %50 = arith.mulf %46, %49 : vector<2x6x128xf32>
    %cst_31 = arith.constant dense<0.000000e+00> : vector<2x6xf32>
    %51 = vector.multi_reduction <add>, %50, %cst_31 [2] : vector<2x6x128xf32> to vector<2x6xf32>
    %cst_32 = arith.constant 0.333333343 : f32
    %52 = vector.broadcast %cst_32 : f32 to vector<2x6xf32>
    %53 = arith.mulf %51, %52 : vector<2x6xf32>
    %cst_33 = arith.constant dense<0xFF800000> : vector<2xf32>
    %54 = vector.multi_reduction <maximumf>, %53, %cst_33 [1] : vector<2x6xf32> to vector<2xf32>
    %55 = vector.shape_cast %54 : vector<2xf32> to vector<2x1xf32>
    %56 = vector.broadcast %55 : vector<2x1xf32> to vector<2x6xf32>
    %57 = arith.subf %53, %56 : vector<2x6xf32>
    %58 = math.exp %57 : vector<2x6xf32>
    %cst_34 = arith.constant dense<0.000000e+00> : vector<2xf32>
    %59 = vector.multi_reduction <add>, %58, %cst_34 [1] : vector<2x6xf32> to vector<2xf32>
    %60 = vector.shape_cast %59 : vector<2xf32> to vector<2x1xf32>
    %61 = vector.broadcast %60 : vector<2x1xf32> to vector<2x6xf32>
    %62 = arith.divf %58, %61 : vector<2x6xf32>
    %c0_35 = arith.constant 0 : index
    %c0_36 = arith.constant 0 : index
    %63 = vector.load %arg18[%c0_35, %c0_36] : memref<2x6xf32, #tpu.memory_space<vmem>>, vector<2x6xf32>
    tpu.vector_store %arg18[%c0_35, %c0_36], %62 {strides = array<i32>} : memref<2x6xf32, #tpu.memory_space<vmem>>, vector<2x6xf32>,
    %64 = vector.shape_cast %62 : vector<2x6xf32> to vector<2x6x1xf32>
    %65 = vector.broadcast %64 : vector<2x6x1xf32> to vector<2x6x128xf32>
    %66 = arith.mulf %46, %65 : vector<2x6x128xf32>
    %cst_37 = arith.constant dense<0.000000e+00> : vector<2x128xf32>
    %67 = vector.multi_reduction <add>, %66, %cst_37 [1] : vector<2x6x128xf32> to vector<2x128xf32>
    %c0_38 = arith.constant 0 : index
    %c0_39 = arith.constant 0 : index
    %68 = vector.load %arg13[%c0_38, %c0_39] : memref<2x128xf32, #tpu.memory_space<vmem>>, vector<2x128xf32>
    tpu.vector_store %arg13[%c0_38, %c0_39], %67 {strides = array<i32>} : memref<2x128xf32, #tpu.memory_space<vmem>>, vector<2x128xf32>,
    %c0_40 = arith.constant 0 : index
    %c0_41 = arith.constant 0 : index
    %c0_42 = arith.constant 0 : index
    %69 = vector.load %arg4[%c0_40, %c0_41, %c0_42] : memref<2x6x128xf32, #tpu.memory_space<vmem>>, vector<2x6x128xf32>
    %c0_43 = arith.constant 0 : index
    %c0_44 = arith.constant 0 : index
    %70 = vector.load %arg9[%c0_43, %c0_44] : memref<2x128xf32, #tpu.memory_space<vmem>>, vector<2x128xf32>
    %71 = vector.shape_cast %70 : vector<2x128xf32> to vector<2x1x128xf32>
    %72 = vector.broadcast %71 : vector<2x1x128xf32> to vector<2x6x128xf32>
    %73 = arith.mulf %69, %72 : vector<2x6x128xf32>
    %cst_45 = arith.constant dense<0.000000e+00> : vector<2x6xf32>
    %74 = vector.multi_reduction <add>, %73, %cst_45 [2] : vector<2x6x128xf32> to vector<2x6xf32>
    %cst_46 = arith.constant 0.333333343 : f32
    %75 = vector.broadcast %cst_46 : f32 to vector<2x6xf32>
    %76 = arith.mulf %74, %75 : vector<2x6xf32>
    %cst_47 = arith.constant dense<0xFF800000> : vector<2xf32>
    %77 = vector.multi_reduction <maximumf>, %76, %cst_47 [1] : vector<2x6xf32> to vector<2xf32>
    %78 = vector.shape_cast %77 : vector<2xf32> to vector<2x1xf32>
    %79 = vector.broadcast %78 : vector<2x1xf32> to vector<2x6xf32>
    %80 = arith.subf %76, %79 : vector<2x6xf32>
    %81 = math.exp %80 : vector<2x6xf32>
    %cst_48 = arith.constant dense<0.000000e+00> : vector<2xf32>
    %82 = vector.multi_reduction <add>, %81, %cst_48 [1] : vector<2x6xf32> to vector<2xf32>
    %83 = vector.shape_cast %82 : vector<2xf32> to vector<2x1xf32>
    %84 = vector.broadcast %83 : vector<2x1xf32> to vector<2x6xf32>
    %85 = arith.divf %81, %84 : vector<2x6xf32>
    %c0_49 = arith.constant 0 : index
    %c0_50 = arith.constant 0 : index
    %86 = vector.load %arg19[%c0_49, %c0_50] : memref<2x6xf32, #tpu.memory_space<vmem>>, vector<2x6xf32>
    tpu.vector_store %arg19[%c0_49, %c0_50], %85 {strides = array<i32>} : memref<2x6xf32, #tpu.memory_space<vmem>>, vector<2x6xf32>,
    %87 = vector.shape_cast %85 : vector<2x6xf32> to vector<2x6x1xf32>
    %88 = vector.broadcast %87 : vector<2x6x1xf32> to vector<2x6x128xf32>
    %89 = arith.mulf %69, %88 : vector<2x6x128xf32>
    %cst_51 = arith.constant dense<0.000000e+00> : vector<2x128xf32>
    %90 = vector.multi_reduction <add>, %89, %cst_51 [1] : vector<2x6x128xf32> to vector<2x128xf32>
    %c0_52 = arith.constant 0 : index
    %c0_53 = arith.constant 0 : index
    %91 = vector.load %arg14[%c0_52, %c0_53] : memref<2x128xf32, #tpu.memory_space<vmem>>, vector<2x128xf32>
    tpu.vector_store %arg14[%c0_52, %c0_53], %90 {strides = array<i32>} : memref<2x128xf32, #tpu.memory_space<vmem>>, vector<2x128xf32>,
    %c0_54 = arith.constant 0 : index
    %c0_55 = arith.constant 0 : index
    %c0_56 = arith.constant 0 : index
    %92 = vector.load %arg5[%c0_54, %c0_55, %c0_56] : memref<2x6x128xf32, #tpu.memory_space<vmem>>, vector<2x6x128xf32>
    %c0_57 = arith.constant 0 : index
    %c0_58 = arith.constant 0 : index
    %93 = vector.load %arg10[%c0_57, %c0_58] : memref<2x128xf32, #tpu.memory_space<vmem>>, vector<2x128xf32>
    %94 = vector.shape_cast %93 : vector<2x128xf32> to vector<2x1x128xf32>
    %95 = vector.broadcast %94 : vector<2x1x128xf32> to vector<2x6x128xf32>
    %96 = arith.mulf %92, %95 : vector<2x6x128xf32>
    %cst_59 = arith.constant dense<0.000000e+00> : vector<2x6xf32>
    %97 = vector.multi_reduction <add>, %96, %cst_59 [2] : vector<2x6x128xf32> to vector<2x6xf32>
    %cst_60 = arith.constant 0.333333343 : f32
    %98 = vector.broadcast %cst_60 : f32 to vector<2x6xf32>
    %99 = arith.mulf %97, %98 : vector<2x6xf32>
    %cst_61 = arith.constant dense<0xFF800000> : vector<2xf32>
    %100 = vector.multi_reduction <maximumf>, %99, %cst_61 [1] : vector<2x6xf32> to vector<2xf32>
    %101 = vector.shape_cast %100 : vector<2xf32> to vector<2x1xf32>
    %102 = vector.broadcast %101 : vector<2x1xf32> to vector<2x6xf32>
    %103 = arith.subf %99, %102 : vector<2x6xf32>
    %104 = math.exp %103 : vector<2x6xf32>
    %cst_62 = arith.constant dense<0.000000e+00> : vector<2xf32>
    %105 = vector.multi_reduction <add>, %104, %cst_62 [1] : vector<2x6xf32> to vector<2xf32>
    %106 = vector.shape_cast %105 : vector<2xf32> to vector<2x1xf32>
    %107 = vector.broadcast %106 : vector<2x1xf32> to vector<2x6xf32>
    %108 = arith.divf %104, %107 : vector<2x6xf32>
    %c0_63 = arith.constant 0 : index
    %c0_64 = arith.constant 0 : index
    %109 = vector.load %arg20[%c0_63, %c0_64] : memref<2x6xf32, #tpu.memory_space<vmem>>, vector<2x6xf32>
    tpu.vector_store %arg20[%c0_63, %c0_64], %108 {strides = array<i32>} : memref<2x6xf32, #tpu.memory_space<vmem>>, vector<2x6xf32>,
    %110 = vector.shape_cast %108 : vector<2x6xf32> to vector<2x6x1xf32>
    %111 = vector.broadcast %110 : vector<2x6x1xf32> to vector<2x6x128xf32>
    %112 = arith.mulf %92, %111 : vector<2x6x128xf32>
    %cst_65 = arith.constant dense<0.000000e+00> : vector<2x128xf32>
    %113 = vector.multi_reduction <add>, %112, %cst_65 [1] : vector<2x6x128xf32> to vector<2x128xf32>
    %c0_66 = arith.constant 0 : index
    %c0_67 = arith.constant 0 : index
    %114 = vector.load %arg15[%c0_66, %c0_67] : memref<2x128xf32, #tpu.memory_space<vmem>>, vector<2x128xf32>
    tpu.vector_store %arg15[%c0_66, %c0_67], %113 {strides = array<i32>} : memref<2x128xf32, #tpu.memory_space<vmem>>, vector<2x128xf32>,
    return
  }
  func.func @transform_0(%arg0: i32) -> (i32, i32, i32) {
    %c0_i32 = arith.constant 0 : i32
    %c0_i32_0 = arith.constant 0 : i32
    %c0_i32_1 = arith.constant 0 : i32
    %c0_i32_2 = arith.constant 0 : i32
    return %c0_i32, %c0_i32_0, %c0_i32_1 : i32, i32, i32
  }
  func.func @transform_1(%arg0: i32) -> (i32, i32, i32) {
    %c0_i32 = arith.constant 0 : i32
    %c0_i32_0 = arith.constant 0 : i32
    %c0_i32_1 = arith.constant 0 : i32
    %c0_i32_2 = arith.constant 0 : i32
    return %c0_i32, %c0_i32_0, %c0_i32_1 : i32, i32, i32
  }
  func.func @transform_2(%arg0: i32) -> (i32, i32, i32) {
    %c0_i32 = arith.constant 0 : i32
    %c0_i32_0 = arith.constant 0 : i32
    %c0_i32_1 = arith.constant 0 : i32
    %c0_i32_2 = arith.constant 0 : i32
    return %c0_i32, %c0_i32_0, %c0_i32_1 : i32, i32, i32
  }
  func.func @transform_3(%arg0: i32) -> (i32, i32, i32) {
    %c0_i32 = arith.constant 0 : i32
    %c0_i32_0 = arith.constant 0 : i32
    %c0_i32_1 = arith.constant 0 : i32
    %c0_i32_2 = arith.constant 0 : i32
    return %c0_i32, %c0_i32_0, %c0_i32_1 : i32, i32, i32
  }
  func.func @transform_4(%arg0: i32) -> (i32, i32, i32) {
    %c0_i32 = arith.constant 0 : i32
    %c0_i32_0 = arith.constant 0 : i32
    %c0_i32_1 = arith.constant 0 : i32
    %c0_i32_2 = arith.constant 0 : i32
    return %c0_i32, %c0_i32_0, %c0_i32_1 : i32, i32, i32
  }
  func.func @transform_5(%arg0: i32) -> (i32, i32) {
    %c0_i32 = arith.constant 0 : i32
    %c0_i32_0 = arith.constant 0 : i32
    %c0_i32_1 = arith.constant 0 : i32
    return %c0_i32, %c0_i32_0 : i32, i32
  }
  func.func @transform_6(%arg0: i32) -> (i32, i32) {
    %c0_i32 = arith.constant 0 : i32
    %c0_i32_0 = arith.constant 0 : i32
    %c0_i32_1 = arith.constant 0 : i32
    return %c0_i32, %c0_i32_0 : i32, i32
  }
  func.func @transform_7(%arg0: i32) -> (i32, i32) {
    %c0_i32 = arith.constant 0 : i32
    %c0_i32_0 = arith.constant 0 : i32
    %c0_i32_1 = arith.constant 0 : i32
    return %c0_i32, %c0_i32_0 : i32, i32
  }
  func.func @transform_8(%arg0: i32) -> (i32, i32) {
    %c0_i32 = arith.constant 0 : i32
    %c0_i32_0 = arith.constant 0 : i32
    %c0_i32_1 = arith.constant 0 : i32
    return %c0_i32, %c0_i32_0 : i32, i32
  }
  func.func @transform_9(%arg0: i32) -> (i32, i32) {
    %c0_i32 = arith.constant 0 : i32
    %c0_i32_0 = arith.constant 0 : i32
    %c0_i32_1 = arith.constant 0 : i32
    return %c0_i32, %c0_i32_0 : i32, i32
  }
  func.func @transform_10(%arg0: i32) -> (i32, i32) {
    %c0_i32 = arith.constant 0 : i32
    %c0_i32_0 = arith.constant 0 : i32
    %c0_i32_1 = arith.constant 0 : i32
    return %c0_i32, %c0_i32_0 : i32, i32
  }
  func.func @transform_11(%arg0: i32) -> (i32, i32) {
    %c0_i32 = arith.constant 0 : i32
    %c0_i32_0 = arith.constant 0 : i32
    %c0_i32_1 = arith.constant 0 : i32
    return %c0_i32, %c0_i32_0 : i32, i32
  }
  func.func @transform_12(%arg0: i32) -> (i32, i32) {
    %c0_i32 = arith.constant 0 : i32
    %c0_i32_0 = arith.constant 0 : i32
    %c0_i32_1 = arith.constant 0 : i32
    return %c0_i32, %c0_i32_0 : i32, i32
  }
  func.func @transform_13(%arg0: i32) -> (i32, i32) {
    %c0_i32 = arith.constant 0 : i32
    %c0_i32_0 = arith.constant 0 : i32
    %c0_i32_1 = arith.constant 0 : i32
    return %c0_i32, %c0_i32_0 : i32, i32
  }
  func.func @transform_14(%arg0: i32) -> (i32, i32) {
    %c0_i32 = arith.constant 0 : i32
    %c0_i32_0 = arith.constant 0 : i32
    %c0_i32_1 = arith.constant 0 : i32
    return %c0_i32, %c0_i32_0 : i32, i32
  }
  func.func @transform_15(%arg0: i32) -> (i32, i32) {
    %c0_i32 = arith.constant 0 : i32
    %c0_i32_0 = arith.constant 0 : i32
    %c0_i32_1 = arith.constant 0 : i32
    return %c0_i32, %c0_i32_0 : i32, i32
  }
  func.func @transform_16(%arg0: i32) -> (i32, i32) {
    %c0_i32 = arith.constant 0 : i32
    %c0_i32_0 = arith.constant 0 : i32
    %c0_i32_1 = arith.constant 0 : i32
    return %c0_i32, %c0_i32_0 : i32, i32
  }
  func.func @transform_17(%arg0: i32) -> (i32, i32) {
    %c0_i32 = arith.constant 0 : i32
    %c0_i32_0 = arith.constant 0 : i32
    %c0_i32_1 = arith.constant 0 : i32
    return %c0_i32, %c0_i32_0 : i32, i32
  }
  func.func @transform_18(%arg0: i32) -> (i32, i32) {
    %c0_i32 = arith.constant 0 : i32
    %c0_i32_0 = arith.constant 0 : i32
    %c0_i32_1 = arith.constant 0 : i32
    return %c0_i32, %c0_i32_0 : i32, i32
  }
  func.func @transform_19(%arg0: i32) -> (i32, i32) {
    %c0_i32 = arith.constant 0 : i32
    %c0_i32_0 = arith.constant 0 : i32
    %c0_i32_1 = arith.constant 0 : i32
    return %c0_i32, %c0_i32_0 : i32, i32
  }
}

</mosaic_0001>

<llo_original>
// kernel: tpu_custom_call.1
$region0: #{tpu_custom_call.1}
  #allocation0 [shape = 'u32[]', space=smem, size = 0x4, offset = 0x4, fixed_abs, tag = 'smem constant byte address 0x4 - core index']
  #allocation1 [shape = 'u32[72,128]{1,0:T(1,128)}', space=vmem, size = 0x9000, scoped, tag = 'internal scratch']
  %s0 = inlined_call_operand.vmem [shape: f32[2,6,128], index: 0, kind: input, shape index: {}]
  %s1 = inlined_call_operand.vmem [shape: f32[2,6,128], index: 1, kind: input, shape index: {}]
  %s2 = inlined_call_operand.vmem [shape: f32[2,6,128], index: 2, kind: input, shape index: {}]
  %s3 = inlined_call_operand.vmem [shape: f32[2,6,128], index: 3, kind: input, shape index: {}]
  %s4 = inlined_call_operand.vmem [shape: f32[2,6,128], index: 4, kind: input, shape index: {}]
  %s5 = inlined_call_operand.vmem [shape: f32[2,128], index: 5, kind: input, shape index: {}]
  %s6 = inlined_call_operand.vmem [shape: f32[2,128], index: 6, kind: input, shape index: {}]
  %s7 = inlined_call_operand.vmem [shape: f32[2,128], index: 7, kind: input, shape index: {}]
  %s8 = inlined_call_operand.vmem [shape: f32[2,128], index: 8, kind: input, shape index: {}]
  %s9 = inlined_call_operand.vmem [shape: f32[2,128], index: 9, kind: input, shape index: {}]
  %s10 = inlined_call_operand.hbm [shape: f32[2,128], index: 10, kind: output, shape index: {0}]
  %s11 = inlined_call_operand.hbm [shape: f32[2,128], index: 11, kind: output, shape index: {1}]
  %s12 = inlined_call_operand.hbm [shape: f32[2,128], index: 12, kind: output, shape index: {2}]
  %s13 = inlined_call_operand.hbm [shape: f32[2,128], index: 13, kind: output, shape index: {3}]
  %s14 = inlined_call_operand.hbm [shape: f32[2,128], index: 14, kind: output, shape index: {4}]
  %s15 = inlined_call_operand.hbm [shape: f32[2,6], index: 15, kind: output, shape index: {5}]
  %s16 = inlined_call_operand.hbm [shape: f32[2,6], index: 16, kind: output, shape index: {6}]
  %s17 = inlined_call_operand.hbm [shape: f32[2,6], index: 17, kind: output, shape index: {7}]
  %s18 = inlined_call_operand.hbm [shape: f32[2,6], index: 18, kind: output, shape index: {8}]
  %s19 = inlined_call_operand.hbm [shape: f32[2,6], index: 19, kind: output, shape index: {9}]
  %20 = xla_tuple %s10, %s11, %s12, %s13, %s14, %s15, %s16, %s17, %s18, %s19
  %s21 = sld [smem:[#allocation0]]
  $region122: #{tpu_custom_call.1} parent=0
    _
  %s23 = ssub.s32 1, %s21
  %s24 = scalar_select 0, %s23, %s21
  $region1: #{tpu_custom_call.1} parent=0
    #allocation2 [shape = 'u8[1024]{0}', space=vmem, size = 0x400, scoped, tag = 'output window, operand 0, single buffered']
    #allocation3 [shape = 's32[1]{0}', space=sflag, size = 0x4, scoped, tag = 'scoped memory for tpu_custom_call.1']
    #allocation4 [shape = 'u8[1024]{0}', space=vmem, size = 0x400, scoped, tag = 'output window, operand 1, single buffered']
    #allocation5 [shape = 's32[1]{0}', space=sflag, size = 0x4, scoped, tag = 'scoped memory for tpu_custom_call.1']
    #allocation6 [shape = 'u8[1024]{0}', space=vmem, size = 0x400, scoped, tag = 'output window, operand 2, single buffered']
    #allocation7 [shape = 'u8[1024]{0}', space=vmem, size = 0x400, scoped, tag = 'output window, operand 3, single buffered']
    #allocation8 [shape = 's32[1]{0}', space=sflag, size = 0x4, scoped, tag = 'scoped memory for tpu_custom_call.1']
    #allocation9 [shape = 'u8[1024]{0}', space=vmem, size = 0x400, scoped, tag = 'output window, operand 4, single buffered']
    #allocation10 [shape = 'u8[1024]{0}', space=vmem, size = 0x400, scoped, tag = 'output window, operand 5, single buffered']
    #allocation11 [shape = 's32[1]{0}', space=sflag, size = 0x4, scoped, tag = 'scoped memory for tpu_custom_call.1']
    #allocation12 [shape = 'u8[1024]{0}', space=vmem, size = 0x400, scoped, tag = 'output window, operand 6, single buffered']
    #allocation13 [shape = 'u8[1024]{0}', space=vmem, size = 0x400, scoped, tag = 'output window, operand 7, single buffered']
    #allocation14 [shape = 's32[1]{0}', space=sflag, size = 0x4, scoped, tag = 'scoped memory for tpu_custom_call.1']
    #allocation15 [shape = 'u8[1024]{0}', space=vmem, size = 0x400, scoped, tag = 'output window, operand 8, single buffered']
    #allocation16 [shape = 'u8[1024]{0}', space=vmem, size = 0x400, scoped, tag = 'output window, operand 9, single buffered']
    #allocation17 [shape = 's32[1]{0}', space=sflag, size = 0x4, scoped, tag = 'scoped memory for tpu_custom_call.1']
    %25 = vsyncpa [#allocation3], 0
    %26 = vsyncpa [#allocation5], 0
    %27 = vsyncpa [#allocation8], 0
    %28 = vsyncpa [#allocation11], 0
    %29 = vsyncpa [#allocation14], 0
    %30 = vsyncpa [#allocation17], 0
    // Predicated region
    $region2: #{tpu_custom_call.1} parent=1 // pred_check
      _
    $region3: #{tpu_custom_call.1} parent=1 // pred_check_branch
      %32 = sbr.rel (0) target = $region5
    $region4: #{tpu_custom_call.1} parent=1 // pred_region
      _
    $region5: #{tpu_custom_call.1} parent=1 // pred_fallthru
      _
    // Predicated region
    $region6: #{tpu_custom_call.1} parent=1 // pred_check
      _
    $region7: #{tpu_custom_call.1} parent=1 // pred_check_branch
      %34 = sbr.rel (0) target = $region9
    $region8: #{tpu_custom_call.1} parent=1 // pred_region
      _
    $region9: #{tpu_custom_call.1} parent=1 // pred_fallthru
      _
    // Predicated region
    $region10: #{tpu_custom_call.1} parent=1 // pred_check
      _
    $region11: #{tpu_custom_call.1} parent=1 // pred_check_branch
      %36 = sbr.rel (0) target = $region13
    $region12: #{tpu_custom_call.1} parent=1 // pred_region
      _
    $region13: #{tpu_custom_call.1} parent=1 // pred_fallthru
      _
    // Predicated region
    $region14: #{tpu_custom_call.1} parent=1 // pred_check
      _
    $region15: #{tpu_custom_call.1} parent=1 // pred_check_branch
      %38 = sbr.rel (0) target = $region17
    $region16: #{tpu_custom_call.1} parent=1 // pred_region
      _
    $region17: #{tpu_custom_call.1} parent=1 // pred_fallthru
      _
    // Predicated region
    $region18: #{tpu_custom_call.1} parent=1 // pred_check
      _
    $region19: #{tpu_custom_call.1} parent=1 // pred_check_branch
      %40 = sbr.rel (0) target = $region21
    $region20: #{tpu_custom_call.1} parent=1 // pred_region
      _
    $region21: #{tpu_custom_call.1} parent=1 // pred_fallthru
      _
    // Predicated region
    $region22: #{tpu_custom_call.1} parent=1 // pred_check
      _
    $region23: #{tpu_custom_call.1} parent=1 // pred_check_branch
      %42 = sbr.rel (0) target = $region25
    $region24: #{tpu_custom_call.1} parent=1 // pred_region
      _
    $region25: #{tpu_custom_call.1} parent=1 // pred_fallthru
      _
    // Predicated region
    $region26: #{tpu_custom_call.1} parent=1 // pred_check
      _
    $region27: #{tpu_custom_call.1} parent=1 // pred_check_branch
      %44 = sbr.rel (0) target = $region29
    $region28: #{tpu_custom_call.1} parent=1 // pred_region
      _
    $region29: #{tpu_custom_call.1} parent=1 // pred_fallthru
      _
    // Predicated region
    $region30: #{tpu_custom_call.1} parent=1 // pred_check
      _
    $region31: #{tpu_custom_call.1} parent=1 // pred_check_branch
      %46 = sbr.rel (0) target = $region33
    $region32: #{tpu_custom_call.1} parent=1 // pred_region
      _
    $region33: #{tpu_custom_call.1} parent=1 // pred_fallthru
      _
    // Predicated region
    $region34: #{tpu_custom_call.1} parent=1 // pred_check
      _
    $region35: #{tpu_custom_call.1} parent=1 // pred_check_branch
      %48 = sbr.rel (0) target = $region37
    $region36: #{tpu_custom_call.1} parent=1 // pred_region
      _
    $region37: #{tpu_custom_call.1} parent=1 // pred_fallthru
      _
    // Predicated region
    $region38: #{tpu_custom_call.1} parent=1 // pred_check
      _
    $region39: #{tpu_custom_call.1} parent=1 // pred_check_branch
      %50 = sbr.rel (0) target = $region41
    $region40: #{tpu_custom_call.1} parent=1 // pred_region
      _
    $region41: #{tpu_custom_call.1} parent=1 // pred_fallthru
      _
    %v51 = vld [vmem:[%s0] sm:$0x3f]
    %v52 = vld [vmem:[%s0 + $0x8] sm:$0x3f]
    %v53 = vld [vmem:[%s5] sm:$0x3]
    %v55 = vrot.slane %v53, 1
    %v56 = vperm.slane %v53, 0
    %v57 = vperm.slane %v55, 0
    %v60 = vmul.f32 %v51, %v56
    %v61 = vmul.f32 %v52, %v57
    %vm62 = vcmask 1045504
    %v63 = vsel %vm62, %v60, 0.0
    %64 = vadd.xlane.f32.xlu0 %v63
    %v65 = vpop.xlane.xlu0 %64
    %v66 = vsel %vm62, %v61, 0.0
    %67 = vadd.xlane.f32.xlu0 %v66
    %v68 = vpop.xlane.xlu0 %67
    %v69 = vmul.f32 %v65, 0.33333334
    %v70 = vmul.f32 %v68, 0.33333334
    %v73 = vlaneseq
    %v74 = vand.u32 %v73, 127
    %v75 = vperm.slane %v69, %v74
    %v76 = vperm.slane %v70, %v74
    %vm77 = vcmask 1041409
    %v78 = vsel %vm77, %v76, %v75
    %vm80 = vcmask 41984
    %v81 = vsel %vm80, %v78, -inf
    %82 = vmax.xlane.f32.xlu0 %v81
    %v83 = vpop.xlane.xlu0 %82
    %v85 = vperm.slane %v83, 0
    %v86 = vperm.slane %v83, 1
    %v89 = vsub.f32 %v69, %v85
    %v90 = vsub.f32 %v70, %v86
    %v91 = vmul.f32 %v89, 1.442695
    %v92 = vpow.pop %v91
    %v93 = vmul.f32 %v90, 1.442695
    %v94 = vpow.pop %v93
    %97 = vset.pattern.permute.xlu0 0
    %98 = vperm.xlu0 %97, %v92
    %v99 = vpop.permute.xlu0 %98
    %100 = vset.pattern.permute.xlu0 0
    %101 = vperm.xlu0 %100, %v94
    %v102 = vpop.permute.xlu0 %101
    %v103 = vperm.slane %v99, %v74
    %v104 = vperm.slane %v102, %v74
    %v105 = vsel %vm77, %v104, %v103
    %v107 = vsel %vm80, %v105, 0.0
    %108 = vadd.xlane.f32.xlu0 %v107
    %v109 = vpop.xlane.xlu0 %108
    %v111 = vperm.slane %v109, 0
    %v112 = vperm.slane %v109, 1
    %v115 = vrcp.pop %v111
    %v116 = vmul.f32 %v111, %v115
    %v117 = vsub.f32 1.0, %v116
    %v118 = vmul.f32 %v115, %v117
    %v119 = vadd.f32 %v115, %v118
    %vm120 = vweird.f32 %v111
    %vm121 = vweird.f32 %v115
    %vm122 = vmor %vm120, %vm121
    %v123 = vsel %vm122, %v115, %v119
    %v124 = vand.u32 2147483647, %v111
    %vm125 = vcmp.eq.f32.partialorder %v124, 8.507059e+37
    %v126 = vand.u32 %v111, 2147483648
    %v127 = vor.u32 1.1754944e-38, %v126
    %v128 = vsel %vm125, %v127, %v123
    %v129 = vmul.f32 %v92, %v128
    %v130 = vrcp.pop %v112
    %v131 = vmul.f32 %v112, %v130
    %v132 = vsub.f32 1.0, %v131
    %v133 = vmul.f32 %v130, %v132
    %v134 = vadd.f32 %v130, %v133
    %vm135 = vweird.f32 %v112
    %vm136 = vweird.f32 %v130
    %vm137 = vmor %vm135, %vm136
    %v138 = vsel %vm137, %v130, %v134
    %v139 = vand.u32 2147483647, %v112
    %vm140 = vcmp.eq.f32.partialorder %v139, 8.507059e+37
    %v141 = vand.u32 %v112, 2147483648
    %v142 = vor.u32 1.1754944e-38, %v141
    %v143 = vsel %vm140, %v142, %v138
    %v144 = vmul.f32 %v94, %v143
    %147 = vset.pattern.permute.xlu0 0
    %148 = vperm.xlu0 %147, %v129
    %v149 = vpop.permute.xlu0 %148
    %150 = vset.pattern.permute.xlu0 0
    %151 = vperm.xlu0 %150, %v144
    %v152 = vpop.permute.xlu0 %151
    %v153 = vperm.slane %v149, %v74
    %v154 = vperm.slane %v152, %v74
    %v155 = vsel %vm77, %v154, %v153
    %157 = vst.msk [vmem:[#allocation10] sm:$0x3] %vm80, %v155
    %v160 = vmul.f32 %v51, %v149
    %v161 = vmul.f32 %v52, %v152
    %v162 = vsel %vm62, %v160, 0.0
    %v163 = vrot.slane %v162, 4
    %v164 = vadd.f32 %v162, %v163
    %v165 = vrot.slane %v164, 2
    %v166 = vadd.f32 %v164, %v165
    %v167 = vrot.slane %v166, 1
    %v168 = vadd.f32 %v166, %v167
    %v169 = vsel %vm62, %v161, 0.0
    %v170 = vrot.slane %v169, 4
    %v171 = vadd.f32 %v169, %v170
    %v172 = vrot.slane %v171, 2
    %v173 = vadd.f32 %v171, %v172
    %v174 = vrot.slane %v173, 1
    %v175 = vadd.f32 %v173, %v174
    %v178 = vsel %vm77, %v175, %v168
    %180 = vst [vmem:[#allocation2] sm:$0x3] %v178
    %v181 = vld [vmem:[%s1] sm:$0x3f]
    %v182 = vld [vmem:[%s1 + $0x8] sm:$0x3f]
    %v183 = vld [vmem:[%s6] sm:$0x3]
    %v185 = vrot.slane %v183, 1
    %v186 = vperm.slane %v183, 0
    %v187 = vperm.slane %v185, 0
    %v190 = vmul.f32 %v181, %v186
    %v191 = vmul.f32 %v182, %v187
    %v192 = vsel %vm62, %v190, 0.0
    %193 = vadd.xlane.f32.xlu0 %v192
    %v194 = vpop.xlane.xlu0 %193
    %v195 = vsel %vm62, %v191, 0.0
    %196 = vadd.xlane.f32.xlu0 %v195
    %v197 = vpop.xlane.xlu0 %196
    %v198 = vmul.f32 %v194, 0.33333334
    %v199 = vmul.f32 %v197, 0.33333334
    %v202 = vperm.slane %v198, %v74
    %v203 = vperm.slane %v199, %v74
    %v204 = vsel %vm77, %v203, %v202
    %v206 = vsel %vm80, %v204, -inf
    %207 = vmax.xlane.f32.xlu0 %v206
    %v208 = vpop.xlane.xlu0 %207
    %v210 = vperm.slane %v208, 0
    %v211 = vperm.slane %v208, 1
    %v214 = vsub.f32 %v198, %v210
    %v215 = vsub.f32 %v199, %v211
    %v216 = vmul.f32 %v214, 1.442695
    %v217 = vpow.pop %v216
    %v218 = vmul.f32 %v215, 1.442695
    %v219 = vpow.pop %v218
    %222 = vset.pattern.permute.xlu0 0
    %223 = vperm.xlu0 %222, %v217
    %v224 = vpop.permute.xlu0 %223
    %225 = vset.pattern.permute.xlu0 0
    %226 = vperm.xlu0 %225, %v219
    %v227 = vpop.permute.xlu0 %226
    %v228 = vperm.slane %v224, %v74
    %v229 = vperm.slane %v227, %v74
    %v230 = vsel %vm77, %v229, %v228
    %v232 = vsel %vm80, %v230, 0.0
    %233 = vadd.xlane.f32.xlu0 %v232
    %v234 = vpop.xlane.xlu0 %233
    %v236 = vperm.slane %v234, 0
    %v237 = vperm.slane %v234, 1
    %v240 = vrcp.pop %v236
    %v241 = vmul.f32 %v236, %v240
    %v242 = vsub.f32 1.0, %v241
    %v243 = vmul.f32 %v240, %v242
    %v244 = vadd.f32 %v240, %v243
    %vm245 = vweird.f32 %v236
    %vm246 = vweird.f32 %v240
    %vm247 = vmor %vm245, %vm246
    %v248 = vsel %vm247, %v240, %v244
    %v249 = vand.u32 2147483647, %v236
    %vm250 = vcmp.eq.f32.partialorder %v249, 8.507059e+37
    %v251 = vand.u32 %v236, 2147483648
    %v252 = vor.u32 1.1754944e-38, %v251
    %v253 = vsel %vm250, %v252, %v248
    %v254 = vmul.f32 %v217, %v253
    %v255 = vrcp.pop %v237
    %v256 = vmul.f32 %v237, %v255
    %v257 = vsub.f32 1.0, %v256
    %v258 = vmul.f32 %v255, %v257
    %v259 = vadd.f32 %v255, %v258
    %vm260 = vweird.f32 %v237
    %vm261 = vweird.f32 %v255
    %vm262 = vmor %vm260, %vm261
    %v263 = vsel %vm262, %v255, %v259
    %v264 = vand.u32 2147483647, %v237
    %vm265 = vcmp.eq.f32.partialorder %v264, 8.507059e+37
    %v266 = vand.u32 %v237, 2147483648
    %v267 = vor.u32 1.1754944e-38, %v266
    %v268 = vsel %vm265, %v267, %v263
    %v269 = vmul.f32 %v219, %v268
    %272 = vset.pattern.permute.xlu0 0
    %273 = vperm.xlu0 %272, %v254
    %v274 = vpop.permute.xlu0 %273
    %275 = vset.pattern.permute.xlu0 0
    %276 = vperm.xlu0 %275, %v269
    %v277 = vpop.permute.xlu0 %276
    %v278 = vperm.slane %v274, %v74
    %v279 = vperm.slane %v277, %v74
    %v280 = vsel %vm77, %v279, %v278
    %282 = vst.msk [vmem:[#allocation12] sm:$0x3] %vm80, %v280
    %v285 = vmul.f32 %v181, %v274
    %v286 = vmul.f32 %v182, %v277
    %v287 = vsel %vm62, %v285, 0.0
    %v288 = vrot.slane %v287, 4
    %v289 = vadd.f32 %v287, %v288
    %v290 = vrot.slane %v289, 2
    %v291 = vadd.f32 %v289, %v290
    %v292 = vrot.slane %v291, 1
    %v293 = vadd.f32 %v291, %v292
    %v294 = vsel %vm62, %v286, 0.0
    %v295 = vrot.slane %v294, 4
    %v296 = vadd.f32 %v294, %v295
    %v297 = vrot.slane %v296, 2
    %v298 = vadd.f32 %v296, %v297
    %v299 = vrot.slane %v298, 1
    %v300 = vadd.f32 %v298, %v299
    %v303 = vsel %vm77, %v300, %v293
    %305 = vst [vmem:[#allocation4] sm:$0x3] %v303
    %v306 = vld [vmem:[%s2] sm:$0x3f]
    %v307 = vld [vmem:[%s2 + $0x8] sm:$0x3f]
    %v308 = vld [vmem:[%s7] sm:$0x3]
    %v310 = vrot.slane %v308, 1
    %v311 = vperm.slane %v308, 0
    %v312 = vperm.slane %v310, 0
    %v315 = vmul.f32 %v306, %v311
    %v316 = vmul.f32 %v307, %v312
    %v317 = vsel %vm62, %v315, 0.0
    %318 = vadd.xlane.f32.xlu0 %v317
    %v319 = vpop.xlane.xlu0 %318
    %v320 = vsel %vm62, %v316, 0.0
    %321 = vadd.xlane.f32.xlu0 %v320
    %v322 = vpop.xlane.xlu0 %321
    %v323 = vmul.f32 %v319, 0.33333334
    %v324 = vmul.f32 %v322, 0.33333334
    %v327 = vperm.slane %v323, %v74
    %v328 = vperm.slane %v324, %v74
    %v329 = vsel %vm77, %v328, %v327
    %v331 = vsel %vm80, %v329, -inf
    %332 = vmax.xlane.f32.xlu0 %v331
    %v333 = vpop.xlane.xlu0 %332
    %v335 = vperm.slane %v333, 0
    %v336 = vperm.slane %v333, 1
    %v339 = vsub.f32 %v323, %v335
    %v340 = vsub.f32 %v324, %v336
    %v341 = vmul.f32 %v339, 1.442695
    %v342 = vpow.pop %v341
    %v343 = vmul.f32 %v340, 1.442695
    %v344 = vpow.pop %v343
    %347 = vset.pattern.permute.xlu0 0
    %348 = vperm.xlu0 %347, %v342
    %v349 = vpop.permute.xlu0 %348
    %350 = vset.pattern.permute.xlu0 0
    %351 = vperm.xlu0 %350, %v344
    %v352 = vpop.permute.xlu0 %351
    %v353 = vperm.slane %v349, %v74
    %v354 = vperm.slane %v352, %v74
    %v355 = vsel %vm77, %v354, %v353
    %v357 = vsel %vm80, %v355, 0.0
    %358 = vadd.xlane.f32.xlu0 %v357
    %v359 = vpop.xlane.xlu0 %358
    %v361 = vperm.slane %v359, 0
    %v362 = vperm.slane %v359, 1
    %v365 = vrcp.pop %v361
    %v366 = vmul.f32 %v361, %v365
    %v367 = vsub.f32 1.0, %v366
    %v368 = vmul.f32 %v365, %v367
    %v369 = vadd.f32 %v365, %v368
    %vm370 = vweird.f32 %v361
    %vm371 = vweird.f32 %v365
    %vm372 = vmor %vm370, %vm371
    %v373 = vsel %vm372, %v365, %v369
    %v374 = vand.u32 2147483647, %v361
    %vm375 = vcmp.eq.f32.partialorder %v374, 8.507059e+37
    %v376 = vand.u32 %v361, 2147483648
    %v377 = vor.u32 1.1754944e-38, %v376
    %v378 = vsel %vm375, %v377, %v373
    %v379 = vmul.f32 %v342, %v378
    %v380 = vrcp.pop %v362
    %v381 = vmul.f32 %v362, %v380
    %v382 = vsub.f32 1.0, %v381
    %v383 = vmul.f32 %v380, %v382
    %v384 = vadd.f32 %v380, %v383
    %vm385 = vweird.f32 %v362
    %vm386 = vweird.f32 %v380
    %vm387 = vmor %vm385, %vm386
    %v388 = vsel %vm387, %v380, %v384
    %v389 = vand.u32 2147483647, %v362
    %vm390 = vcmp.eq.f32.partialorder %v389, 8.507059e+37
    %v391 = vand.u32 %v362, 2147483648
    %v392 = vor.u32 1.1754944e-38, %v391
    %v393 = vsel %vm390, %v392, %v388
    %v394 = vmul.f32 %v344, %v393
    %397 = vset.pattern.permute.xlu0 0
    %398 = vperm.xlu0 %397, %v379
    %v399 = vpop.permute.xlu0 %398
    %400 = vset.pattern.permute.xlu0 0
    %401 = vperm.xlu0 %400, %v394
    %v402 = vpop.permute.xlu0 %401
    %v403 = vperm.slane %v399, %v74
    %v404 = vperm.slane %v402, %v74
    %v405 = vsel %vm77, %v404, %v403
    %407 = vst.msk [vmem:[#allocation13] sm:$0x3] %vm80, %v405
    %v410 = vmul.f32 %v306, %v399
    %v411 = vmul.f32 %v307, %v402
    %v412 = vsel %vm62, %v410, 0.0
    %v413 = vrot.slane %v412, 4
    %v414 = vadd.f32 %v412, %v413
    %v415 = vrot.slane %v414, 2
    %v416 = vadd.f32 %v414, %v415
    %v417 = vrot.slane %v416, 1
    %v418 = vadd.f32 %v416, %v417
    %v419 = vsel %vm62, %v411, 0.0
    %v420 = vrot.slane %v419, 4
    %v421 = vadd.f32 %v419, %v420
    %v422 = vrot.slane %v421, 2
    %v423 = vadd.f32 %v421, %v422
    %v424 = vrot.slane %v423, 1
    %v425 = vadd.f32 %v423, %v424
    %v428 = vsel %vm77, %v425, %v418
    %430 = vst [vmem:[#allocation6] sm:$0x3] %v428
    %v431 = vld [vmem:[%s3] sm:$0x3f]
    %v432 = vld [vmem:[%s3 + $0x8] sm:$0x3f]
    %v433 = vld [vmem:[%s8] sm:$0x3]
    %v435 = vrot.slane %v433, 1
    %v436 = vperm.slane %v433, 0
    %v437 = vperm.slane %v435, 0
    %v440 = vmul.f32 %v431, %v436
    %v441 = vmul.f32 %v432, %v437
    %v442 = vsel %vm62, %v440, 0.0
    %443 = vadd.xlane.f32.xlu0 %v442
    %v444 = vpop.xlane.xlu0 %443
    %v445 = vsel %vm62, %v441, 0.0
    %446 = vadd.xlane.f32.xlu0 %v445
    %v447 = vpop.xlane.xlu0 %446
    %v448 = vmul.f32 %v444, 0.33333334
    %v449 = vmul.f32 %v447, 0.33333334
    %v452 = vperm.slane %v448, %v74
    %v453 = vperm.slane %v449, %v74
    %v454 = vsel %vm77, %v453, %v452
    %v456 = vsel %vm80, %v454, -inf
    %457 = vmax.xlane.f32.xlu0 %v456
    %v458 = vpop.xlane.xlu0 %457
    %v460 = vperm.slane %v458, 0
    %v461 = vperm.slane %v458, 1
    %v464 = vsub.f32 %v448, %v460
    %v465 = vsub.f32 %v449, %v461
    %v466 = vmul.f32 %v464, 1.442695
    %v467 = vpow.pop %v466
    %v468 = vmul.f32 %v465, 1.442695
    %v469 = vpow.pop %v468
    %472 = vset.pattern.permute.xlu0 0
    %473 = vperm.xlu0 %472, %v467
    %v474 = vpop.permute.xlu0 %473
    %475 = vset.pattern.permute.xlu0 0
    %476 = vperm.xlu0 %475, %v469
    %v477 = vpop.permute.xlu0 %476
    %v478 = vperm.slane %v474, %v74
    %v479 = vperm.slane %v477, %v74
    %v480 = vsel %vm77, %v479, %v478
    %v482 = vsel %vm80, %v480, 0.0
    %483 = vadd.xlane.f32.xlu0 %v482
    %v484 = vpop.xlane.xlu0 %483
    %v486 = vperm.slane %v484, 0
    %v487 = vperm.slane %v484, 1
    %v490 = vrcp.pop %v486
    %v491 = vmul.f32 %v486, %v490
    %v492 = vsub.f32 1.0, %v491
    %v493 = vmul.f32 %v490, %v492
    %v494 = vadd.f32 %v490, %v493
    %vm495 = vweird.f32 %v486
    %vm496 = vweird.f32 %v490
    %vm497 = vmor %vm495, %vm496
    %v498 = vsel %vm497, %v490, %v494
    %v499 = vand.u32 2147483647, %v486
    %vm500 = vcmp.eq.f32.partialorder %v499, 8.507059e+37
    %v501 = vand.u32 %v486, 2147483648
    %v502 = vor.u32 1.1754944e-38, %v501
    %v503 = vsel %vm500, %v502, %v498
    %v504 = vmul.f32 %v467, %v503
    %v505 = vrcp.pop %v487
    %v506 = vmul.f32 %v487, %v505
    %v507 = vsub.f32 1.0, %v506
    %v508 = vmul.f32 %v505, %v507
    %v509 = vadd.f32 %v505, %v508
    %vm510 = vweird.f32 %v487
    %vm511 = vweird.f32 %v505
    %vm512 = vmor %vm510, %vm511
    %v513 = vsel %vm512, %v505, %v509
    %v514 = vand.u32 2147483647, %v487
    %vm515 = vcmp.eq.f32.partialorder %v514, 8.507059e+37
    %v516 = vand.u32 %v487, 2147483648
    %v517 = vor.u32 1.1754944e-38, %v516
    %v518 = vsel %vm515, %v517, %v513
    %v519 = vmul.f32 %v469, %v518
    %522 = vset.pattern.permute.xlu0 0
    %523 = vperm.xlu0 %522, %v504
    %v524 = vpop.permute.xlu0 %523
    %525 = vset.pattern.permute.xlu0 0
    %526 = vperm.xlu0 %525, %v519
    %v527 = vpop.permute.xlu0 %526
    %v528 = vperm.slane %v524, %v74
    %v529 = vperm.slane %v527, %v74
    %v530 = vsel %vm77, %v529, %v528
    %532 = vst.msk [vmem:[#allocation15] sm:$0x3] %vm80, %v530
    %v535 = vmul.f32 %v431, %v524
    %v536 = vmul.f32 %v432, %v527
    %v537 = vsel %vm62, %v535, 0.0
    %v538 = vrot.slane %v537, 4
    %v539 = vadd.f32 %v537, %v538
    %v540 = vrot.slane %v539, 2
    %v541 = vadd.f32 %v539, %v540
    %v542 = vrot.slane %v541, 1
    %v543 = vadd.f32 %v541, %v542
    %v544 = vsel %vm62, %v536, 0.0
    %v545 = vrot.slane %v544, 4
    %v546 = vadd.f32 %v544, %v545
    %v547 = vrot.slane %v546, 2
    %v548 = vadd.f32 %v546, %v547
    %v549 = vrot.slane %v548, 1
    %v550 = vadd.f32 %v548, %v549
    %v553 = vsel %vm77, %v550, %v543
    %555 = vst [vmem:[#allocation7] sm:$0x3] %v553
    %v556 = vld [vmem:[%s4] sm:$0x3f]
    %v557 = vld [vmem:[%s4 + $0x8] sm:$0x3f]
    %v558 = vld [vmem:[%s9] sm:$0x3]
    %v560 = vrot.slane %v558, 1
    %v561 = vperm.slane %v558, 0
    %v562 = vperm.slane %v560, 0
    %v565 = vmul.f32 %v556, %v561
    %v566 = vmul.f32 %v557, %v562
    %v567 = vsel %vm62, %v565, 0.0
    %568 = vadd.xlane.f32.xlu0 %v567
    %v569 = vpop.xlane.xlu0 %568
    %v570 = vsel %vm62, %v566, 0.0
    %571 = vadd.xlane.f32.xlu0 %v570
    %v572 = vpop.xlane.xlu0 %571
    %v573 = vmul.f32 %v569, 0.33333334
    %v574 = vmul.f32 %v572, 0.33333334
    %v577 = vperm.slane %v573, %v74
    %v578 = vperm.slane %v574, %v74
    %v579 = vsel %vm77, %v578, %v577
    %v581 = vsel %vm80, %v579, -inf
    %582 = vmax.xlane.f32.xlu0 %v581
    %v583 = vpop.xlane.xlu0 %582
    %v585 = vperm.slane %v583, 0
    %v586 = vperm.slane %v583, 1
    %v589 = vsub.f32 %v573, %v585
    %v590 = vsub.f32 %v574, %v586
    %v591 = vmul.f32 %v589, 1.442695
    %v592 = vpow.pop %v591
    %v593 = vmul.f32 %v590, 1.442695
    %v594 = vpow.pop %v593
    %597 = vset.pattern.permute.xlu0 0
    %598 = vperm.xlu0 %597, %v592
    %v599 = vpop.permute.xlu0 %598
    %600 = vset.pattern.permute.xlu0 0
    %601 = vperm.xlu0 %600, %v594
    %v602 = vpop.permute.xlu0 %601
    %v603 = vperm.slane %v599, %v74
    %v604 = vperm.slane %v602, %v74
    %v605 = vsel %vm77, %v604, %v603
    %v607 = vsel %vm80, %v605, 0.0
    %608 = vadd.xlane.f32.xlu0 %v607
    %v609 = vpop.xlane.xlu0 %608
    %v611 = vperm.slane %v609, 0
    %v612 = vperm.slane %v609, 1
    %v615 = vrcp.pop %v611
    %v616 = vmul.f32 %v611, %v615
    %v617 = vsub.f32 1.0, %v616
    %v618 = vmul.f32 %v615, %v617
    %v619 = vadd.f32 %v615, %v618
    %vm620 = vweird.f32 %v611
    %vm621 = vweird.f32 %v615
    %vm622 = vmor %vm620, %vm621
    %v623 = vsel %vm622, %v615, %v619
    %v624 = vand.u32 2147483647, %v611
    %vm625 = vcmp.eq.f32.partialorder %v624, 8.507059e+37
    %v626 = vand.u32 %v611, 2147483648
    %v627 = vor.u32 1.1754944e-38, %v626
    %v628 = vsel %vm625, %v627, %v623
    %v629 = vmul.f32 %v592, %v628
    %v630 = vrcp.pop %v612
    %v631 = vmul.f32 %v612, %v630
    %v632 = vsub.f32 1.0, %v631
    %v633 = vmul.f32 %v630, %v632
    %v634 = vadd.f32 %v630, %v633
    %vm635 = vweird.f32 %v612
    %vm636 = vweird.f32 %v630
    %vm637 = vmor %vm635, %vm636
    %v638 = vsel %vm637, %v630, %v634
    %v639 = vand.u32 2147483647, %v612
    %vm640 = vcmp.eq.f32.partialorder %v639, 8.507059e+37
    %v641 = vand.u32 %v612, 2147483648
    %v642 = vor.u32 1.1754944e-38, %v641
    %v643 = vsel %vm640, %v642, %v638
    %v644 = vmul.f32 %v594, %v643
    %647 = vset.pattern.permute.xlu0 0
    %648 = vperm.xlu0 %647, %v629
    %v649 = vpop.permute.xlu0 %648
    %650 = vset.pattern.permute.xlu0 0
    %651 = vperm.xlu0 %650, %v644
    %v652 = vpop.permute.xlu0 %651
    %v653 = vperm.slane %v649, %v74
    %v654 = vperm.slane %v652, %v74
    %v655 = vsel %vm77, %v654, %v653
    %657 = vst.msk [vmem:[#allocation16] sm:$0x3] %vm80, %v655
    %v660 = vmul.f32 %v556, %v649
    %v661 = vmul.f32 %v557, %v652
    %v662 = vsel %vm62, %v660, 0.0
    %v663 = vrot.slane %v662, 4
    %v664 = vadd.f32 %v662, %v663
    %v665 = vrot.slane %v664, 2
    %v666 = vadd.f32 %v664, %v665
    %v667 = vrot.slane %v666, 1
    %v668 = vadd.f32 %v666, %v667
    %v669 = vsel %vm62, %v661, 0.0
    %v670 = vrot.slane %v669, 4
    %v671 = vadd.f32 %v669, %v670
    %v672 = vrot.slane %v671, 2
    %v673 = vadd.f32 %v671, %v672
    %v674 = vrot.slane %v673, 1
    %v675 = vadd.f32 %v673, %v674
    %v678 = vsel %vm77, %v675, %v668
    %680 = vst [vmem:[#allocation9] sm:$0x3] %v678
    // Predicated region
    $region42: #{tpu_custom_call.1} parent=1 // pred_check
      _
    $region43: #{tpu_custom_call.1} parent=1 // pred_check_branch
      %682 = sbr.rel (0) target = $region45
    $region44: #{tpu_custom_call.1} parent=1 // pred_region
      %684 = vsyncadd [#allocation3], 0
      %s686 = sshll.u32 [#allocation2], 4
      %s687 = int_to_ptr.vmem [resolvable:$true] %s686
      %s688 = sshll.u32 %s10, 4
      %s689 = int_to_ptr.hbm [resolvable:$true] %s688
      %691 = dma.vmem_to_hbm [thread:$0]  %s687, 32, %s689, [#allocation3]
    $region45: #{tpu_custom_call.1} parent=1 // pred_fallthru
      _
    // Predicated region
    $region46: #{tpu_custom_call.1} parent=1 // pred_check
      _
    $region47: #{tpu_custom_call.1} parent=1 // pred_check_branch
      %693 = sbr.rel (0) target = $region49
    $region48: #{tpu_custom_call.1} parent=1 // pred_region
      %695 = vsyncadd [#allocation5], 0
      %s697 = sshll.u32 [#allocation4], 4
      %s698 = int_to_ptr.vmem [resolvable:$true] %s697
      %s699 = sshll.u32 %s11, 4
      %s700 = int_to_ptr.hbm [resolvable:$true] %s699
      %702 = dma.vmem_to_hbm [thread:$0]  %s698, 32, %s700, [#allocation5]
    $region49: #{tpu_custom_call.1} parent=1 // pred_fallthru
      _
    // Predicated region
    $region50: #{tpu_custom_call.1} parent=1 // pred_check
      _
    $region51: #{tpu_custom_call.1} parent=1 // pred_check_branch
      %704 = sbr.rel (0) target = $region53
    $region52: #{tpu_custom_call.1} parent=1 // pred_region
      %706 = vsyncadd [#allocation5], 0
      %s708 = sshll.u32 [#allocation6], 4
      %s709 = int_to_ptr.vmem [resolvable:$true] %s708
      %s710 = sshll.u32 %s12, 4
      %s711 = int_to_ptr.hbm [resolvable:$true] %s710
      %713 = dma.vmem_to_hbm [thread:$0]  %s709, 32, %s711, [#allocation5]
    $region53: #{tpu_custom_call.1} parent=1 // pred_fallthru
      _
    // Predicated region
    $region54: #{tpu_custom_call.1} parent=1 // pred_check
      _
    $region55: #{tpu_custom_call.1} parent=1 // pred_check_branch
      %715 = sbr.rel (0) target = $region57
    $region56: #{tpu_custom_call.1} parent=1 // pred_region
      %717 = vsyncadd [#allocation8], 0
      %s719 = sshll.u32 [#allocation7], 4
      %s720 = int_to_ptr.vmem [resolvable:$true] %s719
      %s721 = sshll.u32 %s13, 4
      %s722 = int_to_ptr.hbm [resolvable:$true] %s721
      %724 = dma.vmem_to_hbm [thread:$0]  %s720, 32, %s722, [#allocation8]
    $region57: #{tpu_custom_call.1} parent=1 // pred_fallthru
      _
    // Predicated region
    $region58: #{tpu_custom_call.1} parent=1 // pred_check
      _
    $region59: #{tpu_custom_call.1} parent=1 // pred_check_branch
      %726 = sbr.rel (0) target = $region61
    $region60: #{tpu_custom_call.1} parent=1 // pred_region
      %728 = vsyncadd [#allocation8], 0
      %s730 = sshll.u32 [#allocation9], 4
      %s731 = int_to_ptr.vmem [resolvable:$true] %s730
      %s732 = sshll.u32 %s14, 4
      %s733 = int_to_ptr.hbm [resolvable:$true] %s732
      %735 = dma.vmem_to_hbm [thread:$0]  %s731, 32, %s733, [#allocation8]
    $region61: #{tpu_custom_call.1} parent=1 // pred_fallthru
      _
    // Predicated region
    $region62: #{tpu_custom_call.1} parent=1 // pred_check
      _
    $region63: #{tpu_custom_call.1} parent=1 // pred_check_branch
      %737 = sbr.rel (0) target = $region65
    $region64: #{tpu_custom_call.1} parent=1 // pred_region
      %739 = vsyncadd [#allocation11], 0
      %s741 = sshll.u32 [#allocation10], 4
      %s742 = int_to_ptr.vmem [resolvable:$true] %s741
      %s743 = sshll.u32 %s15, 4
      %s744 = int_to_ptr.hbm [resolvable:$true] %s743
      %746 = dma.vmem_to_hbm [thread:$0]  %s742, 32, %s744, [#allocation11]
    $region65: #{tpu_custom_call.1} parent=1 // pred_fallthru
      _
    // Predicated region
    $region66: #{tpu_custom_call.1} parent=1 // pred_check
      _
    $region67: #{tpu_custom_call.1} parent=1 // pred_check_branch
      %748 = sbr.rel (0) target = $region69
    $region68: #{tpu_custom_call.1} parent=1 // pred_region
      %750 = vsyncadd [#allocation11], 0
      %s752 = sshll.u32 [#allocation12], 4
      %s753 = int_to_ptr.vmem [resolvable:$true] %s752
      %s754 = sshll.u32 %s16, 4
      %s755 = int_to_ptr.hbm [resolvable:$true] %s754
      %757 = dma.vmem_to_hbm [thread:$0]  %s753, 32, %s755, [#allocation11]
    $region69: #{tpu_custom_call.1} parent=1 // pred_fallthru
      _
    // Predicated region
    $region70: #{tpu_custom_call.1} parent=1 // pred_check
      _
    $region71: #{tpu_custom_call.1} parent=1 // pred_check_branch
      %759 = sbr.rel (0) target = $region73
    $region72: #{tpu_custom_call.1} parent=1 // pred_region
      %761 = vsyncadd [#allocation14], 0
      %s763 = sshll.u32 [#allocation13], 4
      %s764 = int_to_ptr.vmem [resolvable:$true] %s763
      %s765 = sshll.u32 %s17, 4
      %s766 = int_to_ptr.hbm [resolvable:$true] %s765
      %768 = dma.vmem_to_hbm [thread:$0]  %s764, 32, %s766, [#allocation14]
    $region73: #{tpu_custom_call.1} parent=1 // pred_fallthru
      _
    // Predicated region
    $region74: #{tpu_custom_call.1} parent=1 // pred_check
      _
    $region75: #{tpu_custom_call.1} parent=1 // pred_check_branch
      %770 = sbr.rel (0) target = $region77
    $region76: #{tpu_custom_call.1} parent=1 // pred_region
      %772 = vsyncadd [#allocation14], 0
      %s774 = sshll.u32 [#allocation15], 4
      %s775 = int_to_ptr.vmem [resolvable:$true] %s774
      %s776 = sshll.u32 %s18, 4
      %s777 = int_to_ptr.hbm [resolvable:$true] %s776
      %779 = dma.vmem_to_hbm [thread:$0]  %s775, 32, %s777, [#allocation14]
    $region77: #{tpu_custom_call.1} parent=1 // pred_fallthru
      _
    // Predicated region
    $region78: #{tpu_custom_call.1} parent=1 // pred_check
      _
    $region79: #{tpu_custom_call.1} parent=1 // pred_check_branch
      %781 = sbr.rel (0) target = $region81
    $region80: #{tpu_custom_call.1} parent=1 // pred_region
      %783 = vsyncadd [#allocation17], 0
      %s785 = sshll.u32 [#allocation16], 4
      %s786 = int_to_ptr.vmem [resolvable:$true] %s785
      %s787 = sshll.u32 %s19, 4
      %s788 = int_to_ptr.hbm [resolvable:$true] %s787
      %790 = dma.vmem_to_hbm [thread:$0]  %s786, 32, %s788, [#allocation17]
    $region81: #{tpu_custom_call.1} parent=1 // pred_fallthru
      _
    // Predicated region
    $region82: #{tpu_custom_call.1} parent=1 // pred_check
      _
    $region83: #{tpu_custom_call.1} parent=1 // pred_check_branch
      %792 = sbr.rel (0) target = $region85
    $region84: #{tpu_custom_call.1} parent=1 // pred_region
      %794 = dma.done [#allocation3], 32
    $region85: #{tpu_custom_call.1} parent=1 // pred_fallthru
      _
    // Predicated region
    $region86: #{tpu_custom_call.1} parent=1 // pred_check
      _
    $region87: #{tpu_custom_call.1} parent=1 // pred_check_branch
      %796 = sbr.rel (0) target = $region89
    $region88: #{tpu_custom_call.1} parent=1 // pred_region
      %798 = dma.done [#allocation5], 32
    $region89: #{tpu_custom_call.1} parent=1 // pred_fallthru
      _
    // Predicated region
    $region90: #{tpu_custom_call.1} parent=1 // pred_check
      _
    $region91: #{tpu_custom_call.1} parent=1 // pred_check_branch
      %800 = sbr.rel (0) target = $region93
    $region92: #{tpu_custom_call.1} parent=1 // pred_region
      %802 = dma.done [#allocation5], 32
    $region93: #{tpu_custom_call.1} parent=1 // pred_fallthru
      _
    // Predicated region
    $region94: #{tpu_custom_call.1} parent=1 // pred_check
      _
    $region95: #{tpu_custom_call.1} parent=1 // pred_check_branch
      %804 = sbr.rel (0) target = $region97
    $region96: #{tpu_custom_call.1} parent=1 // pred_region
      %806 = dma.done [#allocation8], 32
    $region97: #{tpu_custom_call.1} parent=1 // pred_fallthru
      _
    // Predicated region
    $region98: #{tpu_custom_call.1} parent=1 // pred_check
      _
    $region99: #{tpu_custom_call.1} parent=1 // pred_check_branch
      %808 = sbr.rel (0) target = $region101
    $region100: #{tpu_custom_call.1} parent=1 // pred_region
      %810 = dma.done [#allocation8], 32
    $region101: #{tpu_custom_call.1} parent=1 // pred_fallthru
      _
    // Predicated region
    $region102: #{tpu_custom_call.1} parent=1 // pred_check
      _
    $region103: #{tpu_custom_call.1} parent=1 // pred_check_branch
      %812 = sbr.rel (0) target = $region105
    $region104: #{tpu_custom_call.1} parent=1 // pred_region
      %814 = dma.done [#allocation11], 32
    $region105: #{tpu_custom_call.1} parent=1 // pred_fallthru
      _
    // Predicated region
    $region106: #{tpu_custom_call.1} parent=1 // pred_check
      _
    $region107: #{tpu_custom_call.1} parent=1 // pred_check_branch
      %816 = sbr.rel (0) target = $region109
    $region108: #{tpu_custom_call.1} parent=1 // pred_region
      %818 = dma.done [#allocation11], 32
    $region109: #{tpu_custom_call.1} parent=1 // pred_fallthru
      _
    // Predicated region
    $region110: #{tpu_custom_call.1} parent=1 // pred_check
      _
    $region111: #{tpu_custom_call.1} parent=1 // pred_check_branch
      %820 = sbr.rel (0) target = $region113
    $region112: #{tpu_custom_call.1} parent=1 // pred_region
      %822 = dma.done [#allocation14], 32
    $region113: #{tpu_custom_call.1} parent=1 // pred_fallthru
      _
    // Predicated region
    $region114: #{tpu_custom_call.1} parent=1 // pred_check
      _
    $region115: #{tpu_custom_call.1} parent=1 // pred_check_branch
      %824 = sbr.rel (0) target = $region117
    $region116: #{tpu_custom_call.1} parent=1 // pred_region
      %826 = dma.done [#allocation14], 32
    $region117: #{tpu_custom_call.1} parent=1 // pred_fallthru
      _
    // Predicated region
    $region118: #{tpu_custom_call.1} parent=1 // pred_check
      _
    $region119: #{tpu_custom_call.1} parent=1 // pred_check_branch
      %828 = sbr.rel (0) target = $region121
    $region120: #{tpu_custom_call.1} parent=1 // pred_region
      %830 = dma.done [#allocation17], 32
    $region121: #{tpu_custom_call.1} parent=1 // pred_fallthru
      _
    %831 = vsyncpa [#allocation3], 1
    %832 = vsyncpa [#allocation5], 1
    %833 = vsyncpa [#allocation8], 1
    %834 = vsyncpa [#allocation11], 1
    %835 = vsyncpa [#allocation14], 1
    %836 = vsyncpa [#allocation17], 1

</llo_original>
